<compile_context>
chip_gen: v7x
topology: tpu7x:2x2x1
jax: 0.10.0
libtpu: 0.0.40
codegen_flags: <defaults>
</compile_context>

<pallas_src>
import jax
import jax.numpy as jnp
from jax.experimental import pallas as pl
from jax.experimental.pallas import tpu as pltpu


def _round_up(n, m):
    return ((n + m - 1) // m) * m


def _mlp_kernel(x_ref, w1_ref, b1_ref, w2_ref, b2_ref, o_ref):
    # x_ref: (3, tb)   w1_ref: (16, 3)  b1_ref: (16, 1)
    # w2_ref: (4, 16)  b2_ref: (4, 1)   o_ref: (4, tb)
    x = x_ref[...]  # f32, batch on the 128-wide lane axis
    h = jnp.dot(w1_ref[...], x, preferred_element_type=jnp.float32) + b1_ref[...]
    # F.leaky_relu, default negative_slope = 0.01
    h = jnp.where(h > 0, h, 0.01 * h)
    # dropout1 (p=0.1) -> identity at inference time
    y = jnp.dot(w2_ref[...], h, preferred_element_type=jnp.float32) + b2_ref[...]
    o_ref[...] = y.astype(o_ref.dtype)


def model_forward_fm(xT, w1, b1, w2, b2, *, tile_b=65536):
    """Feature-major forward pass: xT (3, B) f32 -> (4, B) f32.

    No layout/padding passes: x is streamed once, y written once. Ragged
    batches are handled by Pallas's padded edge blocks (grid = cdiv(B, tb)).
    """
    in_f, B = xT.shape
    hid_f = w1.shape[0]
    out_f = w2.shape[0]

    # Batch tile: multiple of 128 (lane width), no larger than needed, and
    # capped at ~B/2 so the "parallel" grid axis has >=2 steps (v7x megacore).
    tb = min(
        _round_up(tile_b, 128),
        _round_up(B, 128),
        max(128, _round_up((B + 1) // 2, 128)),
    )
    num_tiles = pl.cdiv(B, tb)

    if xT.dtype != jnp.float32:
        xT = xT.astype(jnp.float32)
    b1c = b1.reshape(hid_f, 1).astype(jnp.float32)
    b2c = b2.reshape(out_f, 1).astype(jnp.float32)

    return pl.pallas_call(
        _mlp_kernel,
        out_shape=jax.ShapeDtypeStruct((out_f, B), jnp.float32),
        grid_spec=pltpu.PrefetchScalarGridSpec(
            num_scalar_prefetch=0,
            grid=(num_tiles,),
            in_specs=[
                pl.BlockSpec((in_f, tb), lambda i: (0, i)),       # x tile (streamed)
                pl.BlockSpec((hid_f, in_f), lambda i: (0, 0)),    # w1 (resident)
                pl.BlockSpec((hid_f, 1), lambda i: (0, 0)),       # b1 (resident)
                pl.BlockSpec((out_f, hid_f), lambda i: (0, 0)),   # w2 (resident)
                pl.BlockSpec((out_f, 1), lambda i: (0, 0)),       # b2 (resident)
            ],
            out_specs=pl.BlockSpec((out_f, tb), lambda i: (0, i)),
        ),
        compiler_params=pltpu.CompilerParams(
            dimension_semantics=("parallel",),
            vmem_limit_bytes=32 * 1024 * 1024,
        ),
    )(xT, w1.astype(jnp.float32), b1c, w2.astype(jnp.float32), b2c)


def model_forward(x, w1, b1, w2, b2, *, tile_b=65536):
    """PyTorch-layout compatibility wrapper: x (B, 3) -> (B, 4).

    NOTE: the transpose in/out costs two extra HBM passes on this
    bandwidth-bound op; performance-critical callers should keep activations
    feature-major and call `model_forward_fm` directly.
    """
    yT = model_forward_fm(x.T, w1, b1, w2, b2, tile_b=tile_b)
    return yT.T


def init_params(key):
    """PyTorch nn.Linear-style init; weights stored (out_features, in_features)."""
    k1, k2, k3, k4 = jax.random.split(key, 4)
    bound1 = 1.0 / jnp.sqrt(3.0)
    bound2 = 1.0 / jnp.sqrt(16.0)
    w1 = jax.random.uniform(k1, (16, 3), jnp.float32, -bound1, bound1)
    b1 = jax.random.uniform(k2, (16,), jnp.float32, -bound1, bound1)
    w2 = jax.random.uniform(k3, (4, 16), jnp.float32, -bound2, bound2)
    b2 = jax.random.uniform(k4, (4,), jnp.float32, -bound2, bound2)
    return w1, b1, w2, b2


def reference_forward(x, w1, b1, w2, b2):
    h = x @ w1.T + b1
    h = jnp.where(h > 0, h, 0.01 * h)
    return h @ w2.T + b2


if __name__ == "__main__":
    key = jax.random.PRNGKey(0)
    kx, kx2, kp = jax.random.split(key, 3)
    w1, b1, w2, b2 = init_params(kp)

    # 1) Module-layout path (batch-major, like the PyTorch module): small batch.
    B = 8
    x = jax.random.normal(kx, (B, 3), jnp.float32)
    out = jax.block_until_ready(model_forward(x, w1, b1, w2, b2))
    ref = reference_forward(x, w1, b1, w2, b2)
    assert out.shape == (B, 4), out.shape
    assert jnp.allclose(out, ref, atol=1e-5, rtol=1e-5), "mismatch (batch-major path)"

    # 2) Feature-major hot path: multi-step grid with a ragged last tile.
    B2 = 300
    xT2 = jax.random.normal(kx2, (3, B2), jnp.float32)
    outT2 = jax.block_until_ready(
        model_forward_fm(xT2, w1, b1, w2, b2, tile_b=128))
    refT2 = reference_forward(xT2.T, w1, b1, w2, b2).T
    assert outT2.shape == (4, B2), outT2.shape
    assert jnp.allclose(outT2, refT2, atol=1e-5, rtol=1e-5), "mismatch (feature-major path)"

    print("KERNEL_OK")
</pallas_src>

<mosaic_0001>
module attributes {stable_mosaic.version = 11 : i64} {
  func.func @_mlp_kernel(%arg0: i32, %arg1: memref<3x128xf32, #tpu.memory_space<vmem>>, %arg2: memref<16x3xf32, #tpu.memory_space<vmem>>, %arg3: memref<16x1xf32, #tpu.memory_space<vmem>>, %arg4: memref<4x16xf32, #tpu.memory_space<vmem>>, %arg5: memref<4x1xf32, #tpu.memory_space<vmem>>, %arg6: memref<4x128xf32, #tpu.memory_space<vmem>>) attributes {dimension_semantics = [#tpu.dimension_semantics<parallel>], iteration_bounds = array<i64: 1>, scalar_prefetch = 0 : i64, scratch_operands = 0 : i64, tpu.core_type = #tpu.core_type<tc>, window_params = [{transform_indices = @transform_0, window_bounds = array<i64: 3, 128>}, {pipeline_mode = #tpu.pipeline_mode<synchronous>, transform_indices = @transform_1, window_bounds = array<i64: 16, 3>}, {pipeline_mode = #tpu.pipeline_mode<synchronous>, transform_indices = @transform_2, window_bounds = array<i64: 16, 1>}, {pipeline_mode = #tpu.pipeline_mode<synchronous>, transform_indices = @transform_3, window_bounds = array<i64: 4, 16>}, {pipeline_mode = #tpu.pipeline_mode<synchronous>, transform_indices = @transform_4, window_bounds = array<i64: 4, 1>}, {transform_indices = @transform_5, window_bounds = array<i64: 4, 128>}]} {
    %c0 = arith.constant 0 : index
    %c0_0 = arith.constant 0 : index
    %0 = vector.load %arg1[%c0, %c0_0] : memref<3x128xf32, #tpu.memory_space<vmem>>, vector<3x128xf32>
    %c0_1 = arith.constant 0 : index
    %c0_2 = arith.constant 0 : index
    %1 = vector.load %arg2[%c0_1, %c0_2] : memref<16x3xf32, #tpu.memory_space<vmem>>, vector<16x3xf32>
    %cst = arith.constant dense<0.000000e+00> : vector<16x128xf32>
    %2 = tpu.matmul %1, %0, %cst {dimension_numbers = #tpu.dot_dimension_numbers<[1], [0], [0], [1], [0, 0, 1, 1], [], []>} : vector<16x3xf32>, vector<3x128xf32>, vector<16x128xf32> -> vector<16x128xf32>
    %c0_3 = arith.constant 0 : index
    %c0_4 = arith.constant 0 : index
    %3 = vector.load %arg3[%c0_3, %c0_4] : memref<16x1xf32, #tpu.memory_space<vmem>>, vector<16x1xf32>
    %4 = vector.broadcast %3 : vector<16x1xf32> to vector<16x128xf32>
    %5 = arith.addf %2, %4 : vector<16x128xf32>
    %cst_5 = arith.constant 0.000000e+00 : f32
    %6 = vector.broadcast %cst_5 : f32 to vector<16x128xf32>
    %7 = arith.cmpf ogt, %5, %6 : vector<16x128xf32>
    %cst_6 = arith.constant 0.00999999977 : f32
    %8 = vector.broadcast %cst_6 : f32 to vector<16x128xf32>
    %9 = arith.mulf %8, %5 : vector<16x128xf32>
    %10 = arith.select %7, %5, %9 : vector<16x128xi1>, vector<16x128xf32>
    %c0_7 = arith.constant 0 : index
    %c0_8 = arith.constant 0 : index
    %11 = vector.load %arg4[%c0_7, %c0_8] : memref<4x16xf32, #tpu.memory_space<vmem>>, vector<4x16xf32>
    %cst_9 = arith.constant dense<0.000000e+00> : vector<4x128xf32>
    %12 = tpu.matmul %11, %10, %cst_9 {dimension_numbers = #tpu.dot_dimension_numbers<[1], [0], [0], [1], [0, 0, 1, 1], [], []>} : vector<4x16xf32>, vector<16x128xf32>, vector<4x128xf32> -> vector<4x128xf32>
    %c0_10 = arith.constant 0 : index
    %c0_11 = arith.constant 0 : index
    %13 = vector.load %arg5[%c0_10, %c0_11] : memref<4x1xf32, #tpu.memory_space<vmem>>, vector<4x1xf32>
    %14 = vector.broadcast %13 : vector<4x1xf32> to vector<4x128xf32>
    %15 = arith.addf %12, %14 : vector<4x128xf32>
    %c0_12 = arith.constant 0 : index
    %c0_13 = arith.constant 0 : index
    %16 = vector.load %arg6[%c0_12, %c0_13] : memref<4x128xf32, #tpu.memory_space<vmem>>, vector<4x128xf32>
    tpu.vector_store %arg6[%c0_12, %c0_13], %15 {strides = array<i32>} : memref<4x128xf32, #tpu.memory_space<vmem>>, vector<4x128xf32>,
    return
  }
  func.func @transform_0(%arg0: i32) -> (i32, i32) {
    %c0_i32 = arith.constant 0 : i32
    %c0_i32_0 = arith.constant 0 : i32
    return %c0_i32, %arg0 : i32, i32
  }
  func.func @transform_1(%arg0: i32) -> (i32, i32) {
    %c0_i32 = arith.constant 0 : i32
    %c0_i32_0 = arith.constant 0 : i32
    %c0_i32_1 = arith.constant 0 : i32
    return %c0_i32, %c0_i32_0 : i32, i32
  }
  func.func @transform_2(%arg0: i32) -> (i32, i32) {
    %c0_i32 = arith.constant 0 : i32
    %c0_i32_0 = arith.constant 0 : i32
    %c0_i32_1 = arith.constant 0 : i32
    return %c0_i32, %c0_i32_0 : i32, i32
  }
  func.func @transform_3(%arg0: i32) -> (i32, i32) {
    %c0_i32 = arith.constant 0 : i32
    %c0_i32_0 = arith.constant 0 : i32
    %c0_i32_1 = arith.constant 0 : i32
    return %c0_i32, %c0_i32_0 : i32, i32
  }
  func.func @transform_4(%arg0: i32) -> (i32, i32) {
    %c0_i32 = arith.constant 0 : i32
    %c0_i32_0 = arith.constant 0 : i32
    %c0_i32_1 = arith.constant 0 : i32
    return %c0_i32, %c0_i32_0 : i32, i32
  }
  func.func @transform_5(%arg0: i32) -> (i32, i32) {
    %c0_i32 = arith.constant 0 : i32
    %c0_i32_0 = arith.constant 0 : i32
    return %c0_i32, %arg0 : i32, i32
  }
}

</mosaic_0001>

<llo_original>
// kernel: tpu_custom_call.1
$region0: #{tpu_custom_call.1}
  #allocation0 [shape = 'u32[]', space=smem, size = 0x4, offset = 0x4, fixed_abs, tag = 'smem constant byte address 0x4 - core index']
  #allocation1 [shape = 'u32[144,128]{1,0:T(1,128)}', space=vmem, size = 0x12000, scoped, tag = 'internal scratch']
  %s0 = inlined_call_operand.vmem [shape: f32[3,8], index: 0, kind: input, shape index: {}]
  %s1 = inlined_call_operand.vmem [shape: f32[16,3], index: 1, kind: input, shape index: {}]
  %s2 = inlined_call_operand.vmem [shape: f32[16,1], index: 2, kind: input, shape index: {}]
  %s3 = inlined_call_operand.vmem [shape: f32[4,16], index: 3, kind: input, shape index: {}]
  %s4 = inlined_call_operand.vmem [shape: f32[4,1], index: 4, kind: input, shape index: {}]
  %s5 = inlined_call_operand.hbm [shape: f32[4,8], index: 5, kind: output, shape index: {}]
  %s6 = sld [smem:[#allocation0]]
  $region30: #{tpu_custom_call.1} parent=0
    _
  %s8 = ssub.s32 1, %s6
  %s9 = scalar_select 0, %s8, %s6
  $region1: #{tpu_custom_call.1} parent=0
    #allocation2 [shape = 'u8[2048]{0}', space=vmem, size = 0x800, scoped, tag = 'output window, operand 0, single buffered']
    #allocation3 [shape = 's32[1]{0}', space=sflag, size = 0x4, scoped, tag = 'scoped memory for tpu_custom_call.1']
    %10 = vsyncpa [#allocation3], 0
    // Predicated region
    $region2: #{tpu_custom_call.1} parent=1 // pred_check
      _
    $region3: #{tpu_custom_call.1} parent=1 // pred_check_branch
      %12 = sbr.rel (0) target = $region5
    $region4: #{tpu_custom_call.1} parent=1 // pred_region
      _
    $region5: #{tpu_custom_call.1} parent=1 // pred_fallthru
      _
    // Predicated region
    $region6: #{tpu_custom_call.1} parent=1 // pred_check
      _
    $region7: #{tpu_custom_call.1} parent=1 // pred_check_branch
      %14 = sbr.rel (0) target = $region9
    $region8: #{tpu_custom_call.1} parent=1 // pred_region
      _
    $region9: #{tpu_custom_call.1} parent=1 // pred_fallthru
      _
    // Predicated region
    $region10: #{tpu_custom_call.1} parent=1 // pred_check
      _
    $region11: #{tpu_custom_call.1} parent=1 // pred_check_branch
      %16 = sbr.rel (0) target = $region13
    $region12: #{tpu_custom_call.1} parent=1 // pred_region
      _
    $region13: #{tpu_custom_call.1} parent=1 // pred_fallthru
      _
    // Predicated region
    $region14: #{tpu_custom_call.1} parent=1 // pred_check
      _
    $region15: #{tpu_custom_call.1} parent=1 // pred_check_branch
      %18 = sbr.rel (0) target = $region17
    $region16: #{tpu_custom_call.1} parent=1 // pred_region
      _
    $region17: #{tpu_custom_call.1} parent=1 // pred_fallthru
      _
    // Predicated region
    $region18: #{tpu_custom_call.1} parent=1 // pred_check
      _
    $region19: #{tpu_custom_call.1} parent=1 // pred_check_branch
      %20 = sbr.rel (0) target = $region21
    $region20: #{tpu_custom_call.1} parent=1 // pred_region
      _
    $region21: #{tpu_custom_call.1} parent=1 // pred_fallthru
      _
    %v21 = vld [vmem:[%s0] sm:$0x7]
    %v22 = vld [vmem:[%s1] sm:$0xff]
    %v23 = vld [vmem:[%s1 + $0x8] sm:$0xff]
    %v24 = vld [vmem:[%s2] sm:$0xff]
    %v25 = vld [vmem:[%s2 + $0x8] sm:$0xff]
    %27 = vset.pattern.permute.xlu0 0
    %28 = vperm.xlu0 %27, %v24
    %v29 = vpop.permute.xlu0 %28
    %32 = vset.pattern.permute.xlu0 0
    %33 = vperm.xlu0 %32, %v25
    %v34 = vpop.permute.xlu0 %33
    %vm36 = vcmask 23552
    %v38 = vsel %vm36, %v22, 0
    %v41 = vsel %vm36, %v23, 0
    %vm43 = vcmask 1042432
    %v45 = vsel %vm43, %v21, 0
    %47 = vmatprep.subr.mxu0 0.0
    %48 = vmatpush1.msra.mxu0 %v45
    %49 = vmatprep.subr.mxu0 0.0
    %50 = vmatpush1.msra.mxu0 0.0
    %51 = vmatprep.subr.mxu0 0.0
    %52 = vmatpush1.msra.mxu0 0.0
    %53 = vmatprep.subr.mxu0 0.0
    %54 = vmatpush1.msra.mxu0 0.0
    %55 = vmatprep.subr.mxu0 0.0
    %56 = vmatpush1.msra.mxu0 0.0
    %57 = vmatprep.subr.mxu0 0.0
    %58 = vmatpush1.msra.mxu0 0.0
    %59 = vmatprep.subr.mxu0 0.0
    %60 = vmatpush1.msra.mxu0 0.0
    %61 = vmatprep.subr.mxu0 0.0
    %62 = vmatpush1.msra.mxu0 0.0
    %63 = vmatprep.subr.mxu0 0.0
    %64 = vmatpush1.msra.mxu0 0.0
    %65 = vmatprep.subr.mxu0 0.0
    %66 = vmatpush1.msra.mxu0 0.0
    %67 = vmatprep.subr.mxu0 0.0
    %68 = vmatpush1.msra.mxu0 0.0
    %69 = vmatprep.subr.mxu0 0.0
    %70 = vmatpush1.msra.mxu0 0.0
    %71 = vmatprep.subr.mxu0 0.0
    %72 = vmatpush1.msra.mxu0 0.0
    %73 = vmatprep.subr.mxu0 0.0
    %74 = vmatpush1.msra.mxu0 0.0
    %75 = vmatprep.subr.mxu0 0.0
    %76 = vmatpush1.msra.mxu0 0.0
    %77 = vmatprep.subr.mxu0 0.0
    %78 = vmatpush1.msra.mxu0 0.0
    %79 = vmatprep.subr.mxu0 0.0
    %80 = vmatpush1.msra.mxu0 0.0
    %81 = vmatprep.subr.mxu0 0.0
    %82 = vmatpush1.msra.mxu0 0.0
    %83 = vmatprep.subr.mxu0 0.0
    %84 = vmatpush1.msra.mxu0 0.0
    %85 = vmatprep.subr.mxu0 0.0
    %86 = vmatpush1.msra.mxu0 0.0
    %87 = vmatprep.subr.mxu0 0.0
    %88 = vmatpush1.msra.mxu0 0.0
    %89 = vmatprep.subr.mxu0 0.0
    %90 = vmatpush1.msra.mxu0 0.0
    %91 = vmatprep.subr.mxu0 0.0
    %92 = vmatpush1.msra.mxu0 0.0
    %93 = vmatprep.subr.mxu0 0.0
    %94 = vmatpush1.msra.mxu0 0.0
    %95 = vmatprep.subr.mxu0 0.0
    %96 = vmatpush1.msra.mxu0 0.0
    %97 = vmatprep.subr.mxu0 0.0
    %98 = vmatpush1.msra.mxu0 0.0
    %99 = vmatprep.subr.mxu0 0.0
    %100 = vmatpush1.msra.mxu0 0.0
    %101 = vmatprep.subr.mxu0 0.0
    %102 = vmatpush1.msra.mxu0 0.0
    %103 = vmatprep.subr.mxu0 0.0
    %104 = vmatpush1.msra.mxu0 0.0
    %105 = vmatprep.subr.mxu0 0.0
    %106 = vmatpush1.msra.mxu0 0.0
    %107 = vmatprep.subr.mxu0 0.0
    %108 = vmatpush1.msra.mxu0 0.0
    %109 = vmatprep.subr.mxu0 0.0
    %110 = vmatpush1.msra.mxu0 0.0
    %111 = vmatprep.mubr.f32.mxu0 0.0
    %112 = vmatmul.mubr.f32.gmra.mrb[0].mxu0 %v38
    %v113 = vpop.f32.mrb[0].mxu0
    %v114 = vadd.f32 %v29, %v113
    %v115 = vpop.f32.mrb[0].mxu0
    %116 = vmatprep.mubr.f32.mxu0 0.0
    %117 = vmatmul.mubr.f32.gmra.mrb[0].mxu0 %v41
    %v118 = vpop.f32.mrb[0].mxu0
    %v119 = vadd.f32 %v34, %v118
    %v120 = vpop.f32.mrb[0].mxu0
    %121 = vdwg.mxu0
    %vm122 = vcmp.gt.f32.partialorder %v114, 0.0
    %vm123 = vcmp.gt.f32.partialorder %v119, 0.0
    %v124 = vmul.f32 %v114, 0.01
    %v125 = vmul.f32 %v119, 0.01
    %v126 = vsel %vm122, %v114, %v124
    %v127 = vsel %vm123, %v119, %v125
    %v128 = vld [vmem:[%s3] sm:$0xf]
    %v129 = vld [vmem:[%s4] sm:$0xf]
    %131 = vset.pattern.permute.xlu0 0
    %132 = vperm.xlu0 %131, %v129
    %v133 = vpop.permute.xlu0 %132
    %vm135 = vcmask 130048
    %v137 = vsel %vm135, %v128, 0
    %139 = vmatprep.subr.mxu0 0.0
    %140 = vmatpush1.msra.mxu0 %v126
    %141 = vmatprep.subr.mxu0 0.0
    %142 = vmatpush1.msra.mxu0 %v127
    %143 = vmatprep.subr.mxu0 0.0
    %144 = vmatpush1.msra.mxu0 0.0
    %145 = vmatprep.subr.mxu0 0.0
    %146 = vmatpush1.msra.mxu0 0.0
    %147 = vmatprep.subr.mxu0 0.0
    %148 = vmatpush1.msra.mxu0 0.0
    %149 = vmatprep.subr.mxu0 0.0
    %150 = vmatpush1.msra.mxu0 0.0
    %151 = vmatprep.subr.mxu0 0.0
    %152 = vmatpush1.msra.mxu0 0.0
    %153 = vmatprep.subr.mxu0 0.0
    %154 = vmatpush1.msra.mxu0 0.0
    %155 = vmatprep.subr.mxu0 0.0
    %156 = vmatpush1.msra.mxu0 0.0
    %157 = vmatprep.subr.mxu0 0.0
    %158 = vmatpush1.msra.mxu0 0.0
    %159 = vmatprep.subr.mxu0 0.0
    %160 = vmatpush1.msra.mxu0 0.0
    %161 = vmatprep.subr.mxu0 0.0
    %162 = vmatpush1.msra.mxu0 0.0
    %163 = vmatprep.subr.mxu0 0.0
    %164 = vmatpush1.msra.mxu0 0.0
    %165 = vmatprep.subr.mxu0 0.0
    %166 = vmatpush1.msra.mxu0 0.0
    %167 = vmatprep.subr.mxu0 0.0
    %168 = vmatpush1.msra.mxu0 0.0
    %169 = vmatprep.subr.mxu0 0.0
    %170 = vmatpush1.msra.mxu0 0.0
    %171 = vmatprep.subr.mxu0 0.0
    %172 = vmatpush1.msra.mxu0 0.0
    %173 = vmatprep.subr.mxu0 0.0
    %174 = vmatpush1.msra.mxu0 0.0
    %175 = vmatprep.subr.mxu0 0.0
    %176 = vmatpush1.msra.mxu0 0.0
    %177 = vmatprep.subr.mxu0 0.0
    %178 = vmatpush1.msra.mxu0 0.0
    %179 = vmatprep.subr.mxu0 0.0
    %180 = vmatpush1.msra.mxu0 0.0
    %181 = vmatprep.subr.mxu0 0.0
    %182 = vmatpush1.msra.mxu0 0.0
    %183 = vmatprep.subr.mxu0 0.0
    %184 = vmatpush1.msra.mxu0 0.0
    %185 = vmatprep.subr.mxu0 0.0
    %186 = vmatpush1.msra.mxu0 0.0
    %187 = vmatprep.subr.mxu0 0.0
    %188 = vmatpush1.msra.mxu0 0.0
    %189 = vmatprep.subr.mxu0 0.0
    %190 = vmatpush1.msra.mxu0 0.0
    %191 = vmatprep.subr.mxu0 0.0
    %192 = vmatpush1.msra.mxu0 0.0
    %193 = vmatprep.subr.mxu0 0.0
    %194 = vmatpush1.msra.mxu0 0.0
    %195 = vmatprep.subr.mxu0 0.0
    %196 = vmatpush1.msra.mxu0 0.0
    %197 = vmatprep.subr.mxu0 0.0
    %198 = vmatpush1.msra.mxu0 0.0
    %199 = vmatprep.subr.mxu0 0.0
    %200 = vmatpush1.msra.mxu0 0.0
    %201 = vmatprep.subr.mxu0 0.0
    %202 = vmatpush1.msra.mxu0 0.0
    %203 = vmatprep.mubr.f32.mxu0 0.0
    %204 = vmatmul.mubr.f32.gmra.mrb[0].mxu0 %v137
    %v205 = vpop.f32.mrb[0].mxu0
    %v206 = vadd.f32 %v133, %v205
    %v207 = vpop.f32.mrb[0].mxu0
    %208 = vdwg.mxu0
    %209 = vst [vmem:[#allocation2] sm:$0xf] %v206
    // Predicated region
    $region22: #{tpu_custom_call.1} parent=1 // pred_check
      _
    $region23: #{tpu_custom_call.1} parent=1 // pred_check_branch
      %211 = sbr.rel (0) target = $region25
    $region24: #{tpu_custom_call.1} parent=1 // pred_region
      %s213 = ssub.s32 64, 64
      %214 = vsyncadd [#allocation3], %s213
      %s216 = sshll.u32 [#allocation2], 4
      %s217 = int_to_ptr.vmem [resolvable:$true] %s216
      %219 = dma.vmem_to_hbm [thread:$0]  %s217, 64, %s5, [#allocation3]
    $region25: #{tpu_custom_call.1} parent=1 // pred_fallthru
      _
    // Predicated region
    $region26: #{tpu_custom_call.1} parent=1 // pred_check
      _
    $region27: #{tpu_custom_call.1} parent=1 // pred_check_branch
      %221 = sbr.rel (0) target = $region29
    $region28: #{tpu_custom_call.1} parent=1 // pred_region
      %222 = dma.done [#allocation3], 64
    $region29: #{tpu_custom_call.1} parent=1 // pred_fallthru
      _
    %223 = vsyncpa [#allocation3], 1

</llo_original>
